<compile_context>
chip_gen: v7x
topology: tpu7x:2x2x1
jax: 0.10.0
libtpu: 0.0.40
codegen_flags: <defaults>
</compile_context>

<pallas_src>
import math

import jax
import jax.numpy as jnp
from jax.experimental import pallas as pl
from jax.experimental.pallas import tpu as pltpu

QUBO_SIZE = 8
QUBO_ENTRIES = int(QUBO_SIZE * (QUBO_SIZE + 1) / 2)  # = 36

MAX_TILE_B = 2048      # cap on rows per grid step (multiple of 8)
MIN_GRID_STEPS = 4     # >= 2 steps per TensorCore on v7x + pipeline overlap
SMALL_BATCH_JNP = 64   # below this, plain XLA beats the kernel launch overhead


def _round_up(n, m):
    return ((n + m - 1) // m) * m


def _fused_mlp_kernel(x_ref, w_ref, b_ref, o_ref):
    # One MXU matmul (exact K=36 contraction) + broadcast bias add + ReLU,
    # fully VMEM-resident. Weight / bias blocks are grid-invariant (resident).
    y = jnp.dot(x_ref[...], w_ref[...], preferred_element_type=jnp.float32)
    o_ref[...] = jnp.maximum(y + b_ref[...], 0.0).astype(o_ref.dtype)


def prepare_fused_params(w1, b1, w2, b2):
    """Fuse the two PyTorch-layout linear layers. Call once per weight update.

    w1, w2: (out, in) = (E, E) PyTorch nn.Linear layout; b1, b2: (E,).
    Returns (w_fused (E, E) so that y = x @ w_fused, b_fused (1, E)) in f32.
    Valid because there is no nonlinearity between linear1 and linear2.
    """
    hi = jax.lax.Precision.HIGHEST
    w_fused = jnp.dot(w1.T, w2.T, precision=hi).astype(jnp.float32)        # (E, E)
    b_fused = (jnp.dot(b1, w2.T, precision=hi) + b2).astype(jnp.float32)   # (E,)
    return w_fused, b_fused.reshape(1, -1)


def _choose_tiling(batch):
    """Pick (padded_batch, tile_b): tile_b multiple of 8, <= MAX_TILE_B,
    aiming for >= MIN_GRID_STEPS grid steps once there is enough work."""
    b8 = _round_up(max(batch, 1), 8)
    tile = _round_up(pl.cdiv(b8, MIN_GRID_STEPS), 8)
    tile = max(8, min(tile, MAX_TILE_B))
    b_pad = _round_up(b8, tile)
    return b_pad, tile


@jax.jit
def network_forward_pallas(x, w_fused, b_fused):
    """x: (B, QUBO_ENTRIES) f32. Returns ReLU(linear2(linear1(x)))."""
    B, E = x.shape
    b_pad, tile_b = _choose_tiling(B)
    if b_pad != B:
        # Only the batch (sublane) axis is ever padded; feature axis stays 36.
        x = jnp.pad(x, ((0, b_pad - B), (0, 0)))

    out = pl.pallas_call(
        _fused_mlp_kernel,
        out_shape=jax.ShapeDtypeStruct((b_pad, E), jnp.float32),
        grid=(b_pad // tile_b,),
        in_specs=[
            pl.BlockSpec((tile_b, E), lambda i: (i, 0)),   # activations
            pl.BlockSpec((E, E), lambda i: (0, 0)),        # fused weight (resident)
            pl.BlockSpec((1, E), lambda i: (0, 0)),        # fused bias   (resident)
        ],
        out_specs=pl.BlockSpec((tile_b, E), lambda i: (i, 0)),
        compiler_params=pltpu.CompilerParams(
            dimension_semantics=("parallel",)),  # batch tiles are independent
    )(x, w_fused, b_fused)

    if b_pad != B:
        out = out[:B]
    return out


@jax.jit
def _network_forward_jnp(x, w_fused, b_fused):
    # XLA fallback for tiny batches where the Pallas launch is pure overhead.
    return jnp.maximum(jnp.dot(x, w_fused) + b_fused, 0.0)


def network_forward(x, w_fused, b_fused, *, force_pallas=False):
    # NOTE: in an evolution loop with varying population sizes, bucket B to a
    # few fixed sizes before calling this to avoid per-shape jit recompiles.
    if (not force_pallas) and x.shape[0] < SMALL_BATCH_JNP:
        return _network_forward_jnp(x, w_fused, b_fused)
    return network_forward_pallas(x, w_fused, b_fused)


def _reference_forward(x, w1, b1, w2, b2):
    # Unfused two-matmul reference (original module semantics).
    hi = jax.lax.Precision.HIGHEST
    h = jnp.dot(x, w1.T, precision=hi) + b1
    y = jnp.dot(h, w2.T, precision=hi) + b2
    return jnp.maximum(y, 0.0)


if __name__ == "__main__":
    key = jax.random.PRNGKey(0)
    k_x, k_w1, k_b1, k_w2, k_b2, k_pop = jax.random.split(key, 6)

    B = 2
    E = QUBO_ENTRIES  # 36

    # Deterministic init mimicking nn.Linear default: U(-1/sqrt(in), 1/sqrt(in)).
    bound = 1.0 / math.sqrt(E)
    x = jax.random.normal(k_x, (B, E), dtype=jnp.float32)
    w1 = jax.random.uniform(k_w1, (E, E), jnp.float32, -bound, bound)
    b1 = jax.random.uniform(k_b1, (E,), jnp.float32, -bound, bound)
    w2 = jax.random.uniform(k_w2, (E, E), jnp.float32, -bound, bound)
    b2 = jax.random.uniform(k_b2, (E,), jnp.float32, -bound, bound)

    # Weight prep happens once (outside the forward path).
    w_fused, b_fused = prepare_fused_params(w1, b1, w2, b2)
    jax.block_until_ready((w_fused, b_fused))

    # --- Small-batch call: run the Pallas kernel itself at the module's shape ---
    out = network_forward(x, w_fused, b_fused, force_pallas=True)
    jax.block_until_ready(out)
    ref = _reference_forward(x, w1, b1, w2, b2)
    assert out.shape == (B, E)
    # Fused W1*W2 form differs from the two-matmul form only by f32 rounding.
    assert jnp.allclose(out, ref, atol=1e-4, rtol=1e-4), "mismatch vs reference (small batch)"

    # --- Population-scale batched call (exercises the grid / parallel axis) ---
    POP = 1024  # whole evolution population stacked into one call -> 4 grid steps
    x_pop = jax.random.normal(k_pop, (POP, E), dtype=jnp.float32)
    out_pop = network_forward(x_pop, w_fused, b_fused)
    jax.block_until_ready(out_pop)
    ref_pop = _reference_forward(x_pop, w1, b1, w2, b2)
    assert out_pop.shape == (POP, E)
    assert jnp.allclose(out_pop, ref_pop, atol=1e-4, rtol=1e-4), "mismatch vs reference (population)"

    print("KERNEL_OK")
</pallas_src>

<mosaic_0001>
module attributes {stable_mosaic.version = 11 : i64} {
  func.func @_fused_mlp_kernel(%arg0: i32, %arg1: memref<8x36xf32, #tpu.memory_space<vmem>>, %arg2: memref<36x36xf32, #tpu.memory_space<vmem>>, %arg3: memref<1x36xf32, #tpu.memory_space<vmem>>, %arg4: memref<8x36xf32, #tpu.memory_space<vmem>>) attributes {dimension_semantics = [#tpu.dimension_semantics<parallel>], iteration_bounds = array<i64: 1>, scalar_prefetch = 0 : i64, scratch_operands = 0 : i64, tpu.core_type = #tpu.core_type<tc>, window_params = [{transform_indices = @transform_0, window_bounds = array<i64: 8, 36>}, {pipeline_mode = #tpu.pipeline_mode<synchronous>, transform_indices = @transform_1, window_bounds = array<i64: 36, 36>}, {pipeline_mode = #tpu.pipeline_mode<synchronous>, transform_indices = @transform_2, window_bounds = array<i64: 1, 36>}, {transform_indices = @transform_3, window_bounds = array<i64: 8, 36>}]} {
    %c0 = arith.constant 0 : index
    %c0_0 = arith.constant 0 : index
    %0 = vector.load %arg1[%c0, %c0_0] : memref<8x36xf32, #tpu.memory_space<vmem>>, vector<8x36xf32>
    %c0_1 = arith.constant 0 : index
    %c0_2 = arith.constant 0 : index
    %1 = vector.load %arg2[%c0_1, %c0_2] : memref<36x36xf32, #tpu.memory_space<vmem>>, vector<36x36xf32>
    %cst = arith.constant dense<0.000000e+00> : vector<8x36xf32>
    %2 = tpu.matmul %0, %1, %cst {dimension_numbers = #tpu.dot_dimension_numbers<[1], [0], [0], [1], [0, 0, 1, 1], [], []>} : vector<8x36xf32>, vector<36x36xf32>, vector<8x36xf32> -> vector<8x36xf32>
    %c0_3 = arith.constant 0 : index
    %c0_4 = arith.constant 0 : index
    %3 = vector.load %arg3[%c0_3, %c0_4] : memref<1x36xf32, #tpu.memory_space<vmem>>, vector<1x36xf32>
    %4 = vector.broadcast %3 : vector<1x36xf32> to vector<8x36xf32>
    %5 = arith.addf %2, %4 : vector<8x36xf32>
    %cst_5 = arith.constant 0.000000e+00 : f32
    %6 = vector.broadcast %cst_5 : f32 to vector<8x36xf32>
    %7 = arith.maximumf %5, %6 : vector<8x36xf32>
    %c0_6 = arith.constant 0 : index
    %c0_7 = arith.constant 0 : index
    %8 = vector.load %arg4[%c0_6, %c0_7] : memref<8x36xf32, #tpu.memory_space<vmem>>, vector<8x36xf32>
    tpu.vector_store %arg4[%c0_6, %c0_7], %7 {strides = array<i32>} : memref<8x36xf32, #tpu.memory_space<vmem>>, vector<8x36xf32>,
    return
  }
  func.func @transform_0(%arg0: i32) -> (i32, i32) {
    %c0_i32 = arith.constant 0 : i32
    %c0_i32_0 = arith.constant 0 : i32
    return %arg0, %c0_i32 : i32, i32
  }
  func.func @transform_1(%arg0: i32) -> (i32, i32) {
    %c0_i32 = arith.constant 0 : i32
    %c0_i32_0 = arith.constant 0 : i32
    %c0_i32_1 = arith.constant 0 : i32
    return %c0_i32, %c0_i32_0 : i32, i32
  }
  func.func @transform_2(%arg0: i32) -> (i32, i32) {
    %c0_i32 = arith.constant 0 : i32
    %c0_i32_0 = arith.constant 0 : i32
    %c0_i32_1 = arith.constant 0 : i32
    return %c0_i32, %c0_i32_0 : i32, i32
  }
  func.func @transform_3(%arg0: i32) -> (i32, i32) {
    %c0_i32 = arith.constant 0 : i32
    %c0_i32_0 = arith.constant 0 : i32
    return %arg0, %c0_i32 : i32, i32
  }
}

</mosaic_0001>

<llo_original>
// kernel: network_forward_pallas.1
$region0: #{network_forward_pallas.1}
  #allocation0 [shape = 'u32[]', space=smem, size = 0x4, offset = 0x4, fixed_abs, tag = 'smem constant byte address 0x4 - core index']
  #allocation1 [shape = 'u32[144,128]{1,0:T(1,128)}', space=vmem, size = 0x12000, scoped, tag = 'internal scratch']
  %s0 = inlined_call_operand.vmem [shape: f32[8,36], index: 0, kind: input, shape index: {}]
  %s1 = inlined_call_operand.hbm [shape: f32[36,36], index: 1, kind: input, shape index: {}]
  %s2 = inlined_call_operand.vmem [shape: f32[1,36], index: 2, kind: input, shape index: {}]
  %s3 = inlined_call_operand.vmem [shape: f32[8,36], index: 3, kind: output, shape index: {}]
  %s4 = sld [smem:[#allocation0]]
  $region26: #{network_forward_pallas.1} parent=0
    _
  %s6 = ssub.s32 1, %s4
  %s7 = scalar_select 0, %s6, %s4
  $region1: #{network_forward_pallas.1} parent=0
    #allocation2 [shape = 'u8[20480]{0}', space=vmem, size = 0x5000, scoped, tag = 'input window, operand 1, single buffered']
    #allocation3 [shape = 's32[1]{0}', space=sflag, size = 0x4, scoped, tag = 'scoped memory for network_forward_pallas.1']
    %8 = vsyncpa [#allocation3], 0
    // Predicated region
    $region2: #{network_forward_pallas.1} parent=1 // pred_check
      _
    $region3: #{network_forward_pallas.1} parent=1 // pred_check_branch
      %10 = sbr.rel (0) target = $region5
    $region4: #{network_forward_pallas.1} parent=1 // pred_region
      _
    $region5: #{network_forward_pallas.1} parent=1 // pred_fallthru
      _
    // Predicated region
    $region6: #{network_forward_pallas.1} parent=1 // pred_check
      _
    $region7: #{network_forward_pallas.1} parent=1 // pred_check_branch
      %12 = sbr.rel (0) target = $region9
    $region8: #{network_forward_pallas.1} parent=1 // pred_region
      %s14 = ssub.s32 640, 640
      %15 = vsyncadd [#allocation3], %s14
      %s16 = sshll.u32 [#allocation2], 4
      %s17 = int_to_ptr.vmem [resolvable:$true] %s16
      %22 = dma.hbm_to_vmem [thread:$0]  %s1, 640, %s17, [#allocation3], 128, 128, 8
    $region9: #{network_forward_pallas.1} parent=1 // pred_fallthru
      _
    // Predicated region
    $region10: #{network_forward_pallas.1} parent=1 // pred_check
      _
    $region11: #{network_forward_pallas.1} parent=1 // pred_check_branch
      %24 = sbr.rel (0) target = $region13
    $region12: #{network_forward_pallas.1} parent=1 // pred_region
      _
    $region13: #{network_forward_pallas.1} parent=1 // pred_fallthru
      _
    // Predicated region
    $region14: #{network_forward_pallas.1} parent=1 // pred_check
      _
    $region15: #{network_forward_pallas.1} parent=1 // pred_check_branch
      %26 = sbr.rel (0) target = $region17
    $region16: #{network_forward_pallas.1} parent=1 // pred_region
      %27 = dma.done [#allocation3], 640
    $region17: #{network_forward_pallas.1} parent=1 // pred_fallthru
      _
    %v28 = vld [vmem:[%s0] sm:$0xff]
    %v29 = vld [vmem:[#allocation2] sm:$0xff]
    %v30 = vld [vmem:[#allocation2 + $0x8] sm:$0xff]
    %v31 = vld [vmem:[#allocation2 + $0x10] sm:$0xff]
    %v32 = vld [vmem:[#allocation2 + $0x18] sm:$0xff]
    %v33 = vld [vmem:[#allocation2 + $0x20] sm:$0xf]
    %v34 = vld [vmem:[%s2] sm:$0x1]
    %v36 = vlaneseq
    %v37 = vshrl.u32 %v36, 7
    %v38 = vsub.s32 0, %v37
    %v39 = vrot.slane %v34, %v38
    %vm41 = vcmask 293888
    %v43 = vsel %vm41, %v28, 0
    %vm45 = vcmask 1043456
    %v47 = vsel %vm45, %v33, 0
    %49 = vmatprep.subr.mxu0 0.0
    %50 = vmatpush1.msra.mxu0 %v29
    %51 = vmatprep.subr.mxu0 0.0
    %52 = vmatpush1.msra.mxu0 %v30
    %53 = vmatprep.subr.mxu0 0.0
    %54 = vmatpush1.msra.mxu0 %v31
    %55 = vmatprep.subr.mxu0 0.0
    %56 = vmatpush1.msra.mxu0 %v32
    %57 = vmatprep.subr.mxu0 0.0
    %58 = vmatpush1.msra.mxu0 %v47
    %59 = vmatprep.subr.mxu0 0.0
    %60 = vmatpush1.msra.mxu0 0.0
    %61 = vmatprep.subr.mxu0 0.0
    %62 = vmatpush1.msra.mxu0 0.0
    %63 = vmatprep.subr.mxu0 0.0
    %64 = vmatpush1.msra.mxu0 0.0
    %65 = vmatprep.subr.mxu0 0.0
    %66 = vmatpush1.msra.mxu0 0.0
    %67 = vmatprep.subr.mxu0 0.0
    %68 = vmatpush1.msra.mxu0 0.0
    %69 = vmatprep.subr.mxu0 0.0
    %70 = vmatpush1.msra.mxu0 0.0
    %71 = vmatprep.subr.mxu0 0.0
    %72 = vmatpush1.msra.mxu0 0.0
    %73 = vmatprep.subr.mxu0 0.0
    %74 = vmatpush1.msra.mxu0 0.0
    %75 = vmatprep.subr.mxu0 0.0
    %76 = vmatpush1.msra.mxu0 0.0
    %77 = vmatprep.subr.mxu0 0.0
    %78 = vmatpush1.msra.mxu0 0.0
    %79 = vmatprep.subr.mxu0 0.0
    %80 = vmatpush1.msra.mxu0 0.0
    %81 = vmatprep.subr.mxu0 0.0
    %82 = vmatpush1.msra.mxu0 0.0
    %83 = vmatprep.subr.mxu0 0.0
    %84 = vmatpush1.msra.mxu0 0.0
    %85 = vmatprep.subr.mxu0 0.0
    %86 = vmatpush1.msra.mxu0 0.0
    %87 = vmatprep.subr.mxu0 0.0
    %88 = vmatpush1.msra.mxu0 0.0
    %89 = vmatprep.subr.mxu0 0.0
    %90 = vmatpush1.msra.mxu0 0.0
    %91 = vmatprep.subr.mxu0 0.0
    %92 = vmatpush1.msra.mxu0 0.0
    %93 = vmatprep.subr.mxu0 0.0
    %94 = vmatpush1.msra.mxu0 0.0
    %95 = vmatprep.subr.mxu0 0.0
    %96 = vmatpush1.msra.mxu0 0.0
    %97 = vmatprep.subr.mxu0 0.0
    %98 = vmatpush1.msra.mxu0 0.0
    %99 = vmatprep.subr.mxu0 0.0
    %100 = vmatpush1.msra.mxu0 0.0
    %101 = vmatprep.subr.mxu0 0.0
    %102 = vmatpush1.msra.mxu0 0.0
    %103 = vmatprep.subr.mxu0 0.0
    %104 = vmatpush1.msra.mxu0 0.0
    %105 = vmatprep.subr.mxu0 0.0
    %106 = vmatpush1.msra.mxu0 0.0
    %107 = vmatprep.subr.mxu0 0.0
    %108 = vmatpush1.msra.mxu0 0.0
    %109 = vmatprep.subr.mxu0 0.0
    %110 = vmatpush1.msra.mxu0 0.0
    %111 = vmatprep.subr.mxu0 0.0
    %112 = vmatpush1.msra.mxu0 0.0
    %113 = vmatprep.mubr.f32.mxu0 0.0
    %114 = vmatmul.mubr.f32.gmra.mrb[0].mxu0 %v43
    %v115 = vpop.f32.mrb[0].mxu0
    %v116 = vadd.f32 %v39, %v115
    %v117 = vpop.f32.mrb[0].mxu0
    %118 = vdwg.mxu0
    %v119 = vmax.f32 %v116, 0.0
    %120 = vst.msk [vmem:[%s3] sm:$0xff] %vm41, %v119
    // Predicated region
    $region18: #{network_forward_pallas.1} parent=1 // pred_check
      _
    $region19: #{network_forward_pallas.1} parent=1 // pred_check_branch
      %122 = sbr.rel (0) target = $region21
    $region20: #{network_forward_pallas.1} parent=1 // pred_region
      _
    $region21: #{network_forward_pallas.1} parent=1 // pred_fallthru
      _
    // Predicated region
    $region22: #{network_forward_pallas.1} parent=1 // pred_check
      _
    $region23: #{network_forward_pallas.1} parent=1 // pred_check_branch
      %124 = sbr.rel (0) target = $region25
    $region24: #{network_forward_pallas.1} parent=1 // pred_region
      _
    $region25: #{network_forward_pallas.1} parent=1 // pred_fallthru
      _
    %125 = vsyncpa [#allocation3], 1

</llo_original>
